<compile_context>
chip_gen: v5e
topology: v5e:2x2
jax: 0.10.0
libtpu: 0.0.40
codegen_flags: <defaults>
</compile_context>

<pallas_src>
import jax
import jax.numpy as jnp
from jax.experimental import pallas as pl
from jax.experimental.pallas import tpu as pltpu


def _round_up(x, m):
    return ((x + m - 1) // m) * m


def _recon_kernel(v_ref, c_ref, p_ref, o_ref):
    # v_ref: (2, t_pred, k)       stacked basis [Vx ; Vy] (resident across the grid)
    # c_ref: (k, TILE_L)          singular-space coords, lane = ped*s + sample (zero-padded)
    # p_ref: (6, TILE_L)          per-lane params [r00/sca, r01/sca, r10/sca, r11/sca, ox, oy]
    # o_ref: (2, t_pred, TILE_L)  output planes (plane 0 = x, plane 1 = y)
    c = c_ref[...]
    X = jnp.dot(v_ref[0], c, preferred_element_type=jnp.float32)   # (t_pred, TILE_L)
    Y = jnp.dot(v_ref[1], c, preferred_element_type=jnp.float32)   # (t_pred, TILE_L)

    r00 = p_ref[0:1, :]
    r01 = p_ref[1:2, :]
    r10 = p_ref[2:3, :]
    r11 = p_ref[3:4, :]
    ox = p_ref[4:5, :]
    oy = p_ref[5:6, :]

    # denormalize: (traj / sca) @ rot^T + ori, with 1/sca pre-folded into r**
    o_ref[0] = (X * r00 + Y * r01 + ox).astype(o_ref.dtype)        # aligned whole-plane store
    o_ref[1] = (X * r10 + Y * r11 + oy).astype(o_ref.dtype)


def singular_space_forward(C_pred, V_pred_trunc, traj_ori, traj_rot, traj_sca,
                           *, t_pred, dim, max_tile=8192, return_planar=False):
    """Pallas implementation of SingularSpace.forward (reconstruction).

    C_pred      : (k, N, s)   as passed to the PyTorch forward
    V_pred_trunc: (t_pred*dim, k)
    traj_ori    : (N, dim)    TrajNorm state
    traj_rot    : (N, dim, dim)
    traj_sca    : (N,)
    returns     : (s, N, t_pred, dim)   (or planar (2, t_pred, N, s) if return_planar)
    """
    assert dim == 2, "SingularTrajectory uses 2-D trajectories"
    k, N, s = C_pred.shape
    assert V_pred_trunc.shape == (t_pred * dim, k)
    f32 = jnp.float32

    # --- lane tiling: ped-major lanes (lane = ped*s + sample) ---
    L = N * s
    n_tiles = -(-L // max_tile)                 # big tiles: amortize per-step overhead
    if L > 256 and n_tiles == 1:
        n_tiles = 2                             # keep both v7x TensorCores busy
    if n_tiles > 1 and n_tiles % 2:
        n_tiles += 1                            # even grid for dual-TC sharding
    TILE_L = _round_up(-(-L // n_tiles), 128)   # lane-dense, unmasked stores
    L_pad = n_tiles * TILE_L

    # --- wrapper-side glue (layout plumbing only, no materialized transpose of C) ---
    C_flat = C_pred.reshape(k, L).astype(f32)                            # free reshape
    C_flat = jnp.pad(C_flat, ((0, 0), (0, L_pad - L)))

    # basis stacked [Vx ; Vy] (M rows interleave x,y -> Vx = even rows, Vy = odd rows)
    V = V_pred_trunc.astype(f32)
    V_stack = jnp.stack([V[0::2, :], V[1::2, :]], axis=0)                # (2, t_pred, k)

    # per-pedestrian params: fold 1/sca into rotation, 6-row slab, ped-major repeat.
    sca = traj_sca.reshape(1, N).astype(f32)
    rot_scaled = jnp.stack([traj_rot[:, 0, 0], traj_rot[:, 0, 1],
                            traj_rot[:, 1, 0], traj_rot[:, 1, 1]], axis=0).astype(f32) / sca
    ori = jnp.transpose(traj_ori, (1, 0)).astype(f32)                    # (2, N)
    params = jnp.concatenate([rot_scaled, ori], axis=0)                  # (6, N)
    params = jnp.repeat(params, s, axis=1)                               # (6, N*s) lane = ped*s + sample
    params = jnp.pad(params, ((0, 0), (0, L_pad - L)))

    flops = 2 * (2 * t_pred) * k * L_pad + 8 * t_pred * L_pad
    bytes_accessed = 4 * (2 * t_pred * k + (k + 6 + 2 * t_pred) * L_pad)

    out = pl.pallas_call(
        _recon_kernel,
        out_shape=jax.ShapeDtypeStruct((2, t_pred, L_pad), f32),
        grid_spec=pltpu.PrefetchScalarGridSpec(
            num_scalar_prefetch=0,
            grid=(n_tiles,),
            in_specs=[
                pl.BlockSpec((2, t_pred, k), lambda i: (0, 0, 0)),       # resident basis
                pl.BlockSpec((k, TILE_L), lambda i: (0, i)),             # coords lane tile
                pl.BlockSpec((6, TILE_L), lambda i: (0, i)),             # params lane tile
            ],
            out_specs=pl.BlockSpec((2, t_pred, TILE_L), lambda i: (0, 0, i)),
        ),
        compiler_params=pltpu.CompilerParams(
            dimension_semantics=("parallel",)),      # lane tiles shard across v7x's 2 TCs
        cost_estimate=pl.CostEstimate(flops=flops, transcendentals=0,
                                      bytes_accessed=bytes_accessed),
    )(V_stack, C_flat, params)

    out = out[:, :, :L].reshape(2, t_pred, N, s)
    if return_planar:
        return out                                   # downstream JAX can keep planar layout
    # PyTorch layout (s, N, t_pred, dim): one transpose at the very end (required by spec).
    return jnp.transpose(out, (3, 2, 1, 0))


def reference_forward(C_pred, V, traj_ori, traj_rot, traj_sca):
    """Pure-JAX reference mirroring the PyTorch code path exactly."""
    C = jnp.transpose(C_pred, (2, 0, 1))                              # permute(2,0,1)
    M = jnp.einsum("dk,skn->sdn", V, C)                               # evec @ C (batched)
    b, td, _ = M.shape
    t = td // 2
    traj = jnp.transpose(M, (0, 2, 1)).reshape(b, -1, t, 2)
    # TrajNorm.denormalize
    traj = traj / traj_sca[None, :, None, None]
    traj = jnp.einsum("sntj,nij->snti", traj, traj_rot)               # traj @ rot^T
    traj = traj + traj_ori[None, :, None, :]
    return traj


if __name__ == "__main__":
    # small hyper-parameters consistent with the module
    t_obs, t_pred, dim = 8, 12, 2
    k_trunc, num_samples, num_ped = 8, 4, 3

    key = jax.random.PRNGKey(0)
    k1, k2, k3 = jax.random.split(key, 3)

    # Deterministic "trained" basis (module __init__ zero-inits; training fills via SVD).
    # TODO(synk): truncated_SVD / BSpline parameter_initialization is training-time setup,
    #             not part of forward; basis is synthesized deterministically instead.
    V_pred_trunc = jax.random.normal(k1, (t_pred * dim, k_trunc), dtype=jnp.float32)

    # Synthetic observed trajectory defining TrajNorm state (calculate_params equivalent).
    obs_traj = jax.random.normal(k2, (num_ped, t_obs, dim), dtype=jnp.float32)
    traj_ori = obs_traj[:, -1, :]                                     # (N, 2)
    d = obs_traj[:, -1, :] - obs_traj[:, -3, :]
    theta = jnp.arctan2(d[:, 1], d[:, 0])
    c, s_ = jnp.cos(theta), jnp.sin(theta)
    traj_rot = jnp.stack([jnp.stack([c, -s_], axis=-1),
                          jnp.stack([s_, c], axis=-1)], axis=-2)      # (N, 2, 2)
    traj_sca = 2.0 / jnp.linalg.norm(d, axis=-1)                      # (N,)

    # Singular-space coordinates, same shape convention as the PyTorch forward: (k, N, s)
    C_pred = jax.random.normal(k3, (k_trunc, num_ped, num_samples), dtype=jnp.float32)

    out = singular_space_forward(C_pred, V_pred_trunc, traj_ori, traj_rot, traj_sca,
                                 t_pred=t_pred, dim=dim)
    out = jax.block_until_ready(out)

    ref = reference_forward(C_pred, V_pred_trunc, traj_ori, traj_rot, traj_sca)
    assert out.shape == (num_samples, num_ped, t_pred, dim)
    assert jnp.allclose(out, ref, atol=1e-4, rtol=1e-4), "Pallas kernel mismatch vs reference"
    print("KERNEL_OK")
</pallas_src>

<mosaic_0001>
module attributes {stable_mosaic.version = 11 : i64} {
  func.func @_recon_kernel(%arg0: i32, %arg1: memref<2x12x8xf32, #tpu.memory_space<vmem>>, %arg2: memref<8x128xf32, #tpu.memory_space<vmem>>, %arg3: memref<6x128xf32, #tpu.memory_space<vmem>>, %arg4: memref<2x12x128xf32, #tpu.memory_space<vmem>>) attributes {dimension_semantics = [#tpu.dimension_semantics<parallel>], iteration_bounds = array<i64: 1>, scalar_prefetch = 0 : i64, scratch_operands = 0 : i64, tpu.core_type = #tpu.core_type<tc>, window_params = [{pipeline_mode = #tpu.pipeline_mode<synchronous>, transform_indices = @transform_0, window_bounds = array<i64: 2, 12, 8>}, {transform_indices = @transform_1, window_bounds = array<i64: 8, 128>}, {transform_indices = @transform_2, window_bounds = array<i64: 6, 128>}, {transform_indices = @transform_3, window_bounds = array<i64: 2, 12, 128>}]} {
    %c0 = arith.constant 0 : index
    %c0_0 = arith.constant 0 : index
    %0 = vector.load %arg2[%c0, %c0_0] : memref<8x128xf32, #tpu.memory_space<vmem>>, vector<8x128xf32>
    %c0_1 = arith.constant 0 : index
    %c0_2 = arith.constant 0 : index
    %c0_3 = arith.constant 0 : index
    %1 = vector.load %arg1[%c0_1, %c0_2, %c0_3] : memref<2x12x8xf32, #tpu.memory_space<vmem>>, vector<1x12x8xf32>
    %2 = vector.shape_cast %1 : vector<1x12x8xf32> to vector<12x8xf32>
    %cst = arith.constant dense<0.000000e+00> : vector<12x128xf32>
    %3 = tpu.matmul %2, %0, %cst {dimension_numbers = #tpu.dot_dimension_numbers<[1], [0], [0], [1], [0, 0, 1, 1], [], []>} : vector<12x8xf32>, vector<8x128xf32>, vector<12x128xf32> -> vector<12x128xf32>
    %c1 = arith.constant 1 : index
    %c0_4 = arith.constant 0 : index
    %c0_5 = arith.constant 0 : index
    %4 = vector.load %arg1[%c1, %c0_4, %c0_5] : memref<2x12x8xf32, #tpu.memory_space<vmem>>, vector<1x12x8xf32>
    %5 = vector.shape_cast %4 : vector<1x12x8xf32> to vector<12x8xf32>
    %cst_6 = arith.constant dense<0.000000e+00> : vector<12x128xf32>
    %6 = tpu.matmul %5, %0, %cst_6 {dimension_numbers = #tpu.dot_dimension_numbers<[1], [0], [0], [1], [0, 0, 1, 1], [], []>} : vector<12x8xf32>, vector<8x128xf32>, vector<12x128xf32> -> vector<12x128xf32>
    %c0_7 = arith.constant 0 : index
    %c0_8 = arith.constant 0 : index
    %7 = vector.load %arg3[%c0_7, %c0_8] : memref<6x128xf32, #tpu.memory_space<vmem>>, vector<1x128xf32>
    %c1_9 = arith.constant 1 : index
    %c0_10 = arith.constant 0 : index
    %8 = vector.load %arg3[%c1_9, %c0_10] : memref<6x128xf32, #tpu.memory_space<vmem>>, vector<1x128xf32>
    %c2 = arith.constant 2 : index
    %c0_11 = arith.constant 0 : index
    %9 = vector.load %arg3[%c2, %c0_11] : memref<6x128xf32, #tpu.memory_space<vmem>>, vector<1x128xf32>
    %c3 = arith.constant 3 : index
    %c0_12 = arith.constant 0 : index
    %10 = vector.load %arg3[%c3, %c0_12] : memref<6x128xf32, #tpu.memory_space<vmem>>, vector<1x128xf32>
    %c4 = arith.constant 4 : index
    %c0_13 = arith.constant 0 : index
    %11 = vector.load %arg3[%c4, %c0_13] : memref<6x128xf32, #tpu.memory_space<vmem>>, vector<1x128xf32>
    %c5 = arith.constant 5 : index
    %c0_14 = arith.constant 0 : index
    %12 = vector.load %arg3[%c5, %c0_14] : memref<6x128xf32, #tpu.memory_space<vmem>>, vector<1x128xf32>
    %13 = vector.broadcast %7 : vector<1x128xf32> to vector<12x128xf32>
    %14 = arith.mulf %3, %13 : vector<12x128xf32>
    %15 = vector.broadcast %8 : vector<1x128xf32> to vector<12x128xf32>
    %16 = arith.mulf %6, %15 : vector<12x128xf32>
    %17 = arith.addf %14, %16 : vector<12x128xf32>
    %18 = vector.broadcast %11 : vector<1x128xf32> to vector<12x128xf32>
    %19 = arith.addf %17, %18 : vector<12x128xf32>
    %c0_15 = arith.constant 0 : index
    %c0_16 = arith.constant 0 : index
    %c0_17 = arith.constant 0 : index
    %20 = vector.load %arg4[%c0_15, %c0_16, %c0_17] : memref<2x12x128xf32, #tpu.memory_space<vmem>>, vector<1x12x128xf32>
    %21 = vector.shape_cast %20 : vector<1x12x128xf32> to vector<12x128xf32>
    %22 = vector.shape_cast %19 : vector<12x128xf32> to vector<1x12x128xf32>
    tpu.vector_store %arg4[%c0_15, %c0_16, %c0_17], %22 {strides = array<i32>} : memref<2x12x128xf32, #tpu.memory_space<vmem>>, vector<1x12x128xf32>,
    %23 = vector.broadcast %9 : vector<1x128xf32> to vector<12x128xf32>
    %24 = arith.mulf %3, %23 : vector<12x128xf32>
    %25 = vector.broadcast %10 : vector<1x128xf32> to vector<12x128xf32>
    %26 = arith.mulf %6, %25 : vector<12x128xf32>
    %27 = arith.addf %24, %26 : vector<12x128xf32>
    %28 = vector.broadcast %12 : vector<1x128xf32> to vector<12x128xf32>
    %29 = arith.addf %27, %28 : vector<12x128xf32>
    %c1_18 = arith.constant 1 : index
    %c0_19 = arith.constant 0 : index
    %c0_20 = arith.constant 0 : index
    %30 = vector.load %arg4[%c1_18, %c0_19, %c0_20] : memref<2x12x128xf32, #tpu.memory_space<vmem>>, vector<1x12x128xf32>
    %31 = vector.shape_cast %30 : vector<1x12x128xf32> to vector<12x128xf32>
    %32 = vector.shape_cast %29 : vector<12x128xf32> to vector<1x12x128xf32>
    tpu.vector_store %arg4[%c1_18, %c0_19, %c0_20], %32 {strides = array<i32>} : memref<2x12x128xf32, #tpu.memory_space<vmem>>, vector<1x12x128xf32>,
    return
  }
  func.func @transform_0(%arg0: i32) -> (i32, i32, i32) {
    %c0_i32 = arith.constant 0 : i32
    %c0_i32_0 = arith.constant 0 : i32
    %c0_i32_1 = arith.constant 0 : i32
    %c0_i32_2 = arith.constant 0 : i32
    return %c0_i32, %c0_i32_0, %c0_i32_1 : i32, i32, i32
  }
  func.func @transform_1(%arg0: i32) -> (i32, i32) {
    %c0_i32 = arith.constant 0 : i32
    %c0_i32_0 = arith.constant 0 : i32
    return %c0_i32, %arg0 : i32, i32
  }
  func.func @transform_2(%arg0: i32) -> (i32, i32) {
    %c0_i32 = arith.constant 0 : i32
    %c0_i32_0 = arith.constant 0 : i32
    return %c0_i32, %arg0 : i32, i32
  }
  func.func @transform_3(%arg0: i32) -> (i32, i32, i32) {
    %c0_i32 = arith.constant 0 : i32
    %c0_i32_0 = arith.constant 0 : i32
    %c0_i32_1 = arith.constant 0 : i32
    return %c0_i32, %c0_i32_0, %arg0 : i32, i32, i32
  }
}

</mosaic_0001>

<llo_original>
// kernel: tpu_custom_call.1
$region0: #{tpu_custom_call.1}
  #allocation0 [shape = 'u32[]', space=smem, size = 0x4, offset = 0x4, fixed_abs, tag = 'smem constant byte address 0x4 - core index']
  #allocation1 [shape = 'u32[72,128]{1,0:T(1,128)}', space=vmem, size = 0x9000, scoped, tag = 'internal scratch']
  %s0 = inlined_call_operand.vmem [shape: f32[2,12,8], index: 0, kind: input, shape index: {}]
  %s1 = inlined_call_operand.vmem [shape: f32[8,128], index: 1, kind: input, shape index: {}]
  %s2 = inlined_call_operand.vmem [shape: f32[6,128], index: 2, kind: input, shape index: {}]
  %s3 = inlined_call_operand.vmem [shape: f32[2,12,128], index: 3, kind: output, shape index: {}]
  %s4 = sld [smem:[#allocation0]]
  $region22: #{tpu_custom_call.1} parent=0
    _
  %s6 = ssub.s32 1, %s4
  %s7 = scalar_select 0, %s6, %s4
  // Predicated region
  $region2: #{tpu_custom_call.1} parent=0 // pred_check
    _
  $region3: #{tpu_custom_call.1} parent=0 // pred_check_branch
    %9 = sbr.rel (0) target = $region5
  $region4: #{tpu_custom_call.1} parent=0 // pred_region
    _
  $region5: #{tpu_custom_call.1} parent=0 // pred_fallthru
    _
  // Predicated region
  $region6: #{tpu_custom_call.1} parent=0 // pred_check
    _
  $region7: #{tpu_custom_call.1} parent=0 // pred_check_branch
    %11 = sbr.rel (0) target = $region9
  $region8: #{tpu_custom_call.1} parent=0 // pred_region
    _
  $region9: #{tpu_custom_call.1} parent=0 // pred_fallthru
    _
  // Predicated region
  $region10: #{tpu_custom_call.1} parent=0 // pred_check
    _
  $region11: #{tpu_custom_call.1} parent=0 // pred_check_branch
    %13 = sbr.rel (0) target = $region13
  $region12: #{tpu_custom_call.1} parent=0 // pred_region
    _
  $region13: #{tpu_custom_call.1} parent=0 // pred_fallthru
    _
  %v14 = vld [vmem:[%s1] sm:$0xff]
  %v15 = vld [vmem:[%s0] sm:$0xff]
  %v16 = vld [vmem:[%s0 + $0x8] sm:$0xf]
  %vm17 = vcmask 64512
  %v19 = vsel %vm17, %v15, 0
  %v22 = vsel %vm17, %v16, 0
  %24 = vmatpush.msra.mxu0 0.0
  %25 = vmatpush.msra.mxu0 0.0
  %26 = vmatpush.msra.mxu0 0.0
  %27 = vmatpush.msra.mxu0 0.0
  %28 = vmatpush.msra.mxu0 0.0
  %29 = vmatpush.msra.mxu0 0.0
  %30 = vmatpush.msra.mxu0 0.0
  %31 = vmatpush.msra.mxu0 0.0
  %32 = vmatpush.msra.mxu0 0.0
  %33 = vmatpush.msra.mxu0 0.0
  %34 = vmatpush.msra.mxu0 0.0
  %35 = vmatpush.msra.mxu0 0.0
  %36 = vmatpush.msra.mxu0 0.0
  %37 = vmatpush.msra.mxu0 0.0
  %38 = vmatpush.msra.mxu0 0.0
  %39 = vmatpush.msra.mxu0 %v14
  %40 = vmatmul.f32.gmra.mxu0 %v19
  %v41 = vpop.f32.mrf.mxu0
  %v42 = vadd.f32 0.0, %v41
  %43 = vmatmul.f32.gmra.mxu0 %v22
  %v44 = vpop.f32.mrf.mxu0
  %v45 = vadd.f32 0.0, %v44
  %46 = vdwg.mxu0
  %s47 = scalar_lea.vmem %s0, 16
  %v48 = vld [vmem:[%s47] sm:$0xff]
  %v49 = vld [vmem:[%s47 + $0x8] sm:$0xf]
  %v51 = vsel %vm17, %v48, 0
  %v54 = vsel %vm17, %v49, 0
  %56 = vmatpush.msra.mxu0 0.0
  %57 = vmatpush.msra.mxu0 0.0
  %58 = vmatpush.msra.mxu0 0.0
  %59 = vmatpush.msra.mxu0 0.0
  %60 = vmatpush.msra.mxu0 0.0
  %61 = vmatpush.msra.mxu0 0.0
  %62 = vmatpush.msra.mxu0 0.0
  %63 = vmatpush.msra.mxu0 0.0
  %64 = vmatpush.msra.mxu0 0.0
  %65 = vmatpush.msra.mxu0 0.0
  %66 = vmatpush.msra.mxu0 0.0
  %67 = vmatpush.msra.mxu0 0.0
  %68 = vmatpush.msra.mxu0 0.0
  %69 = vmatpush.msra.mxu0 0.0
  %70 = vmatpush.msra.mxu0 0.0
  %71 = vmatpush.msra.mxu0 %v14
  %72 = vmatmul.f32.gmra.mxu0 %v51
  %v73 = vpop.f32.mrf.mxu0
  %v74 = vadd.f32 0.0, %v73
  %75 = vmatmul.f32.gmra.mxu0 %v54
  %v76 = vpop.f32.mrf.mxu0
  %v77 = vadd.f32 0.0, %v76
  %78 = vdwg.mxu0
  %v79 = vld [vmem:[%s2] sm:$0x1]
  %v80 = vld [vmem:[%s2 + $0x1] sm:$0x1]
  %v81 = vld [vmem:[%s2 + $0x2] sm:$0x1]
  %v82 = vld [vmem:[%s2 + $0x3] sm:$0x1]
  %v83 = vld [vmem:[%s2 + $0x4] sm:$0x1]
  %v84 = vld [vmem:[%s2 + $0x5] sm:$0x1]
  %v85 = vperm.slane %v79, 0
  %v86 = vmul.f32 %v42, %v85
  %v87 = vmul.f32 %v45, %v85
  %v88 = vperm.slane %v80, 0
  %v89 = vmul.f32 %v74, %v88
  %v90 = vmul.f32 %v77, %v88
  %v91 = vadd.f32 %v86, %v89
  %v92 = vadd.f32 %v87, %v90
  %v93 = vperm.slane %v83, 0
  %v94 = vadd.f32 %v91, %v93
  %v95 = vadd.f32 %v92, %v93
  %96 = vst [vmem:[%s3] sm:$0xff] %v94
  %97 = vst [vmem:[%s3 + $0x8] sm:$0xf] %v95
  %v98 = vperm.slane %v81, 0
  %v99 = vmul.f32 %v42, %v98
  %v100 = vmul.f32 %v45, %v98
  %v101 = vperm.slane %v82, 0
  %v102 = vmul.f32 %v74, %v101
  %v103 = vmul.f32 %v77, %v101
  %v104 = vadd.f32 %v99, %v102
  %v105 = vadd.f32 %v100, %v103
  %v106 = vperm.slane %v84, 0
  %v107 = vadd.f32 %v104, %v106
  %v108 = vadd.f32 %v105, %v106
  %s109 = scalar_lea.vmem %s3, 16
  %110 = vst [vmem:[%s109] sm:$0xff] %v107
  %111 = vst [vmem:[%s109 + $0x8] sm:$0xf] %v108
  // Predicated region
  $region14: #{tpu_custom_call.1} parent=0 // pred_check
    _
  $region15: #{tpu_custom_call.1} parent=0 // pred_check_branch
    %113 = sbr.rel (0) target = $region17
  $region16: #{tpu_custom_call.1} parent=0 // pred_region
    _
  $region17: #{tpu_custom_call.1} parent=0 // pred_fallthru
    _
  // Predicated region
  $region18: #{tpu_custom_call.1} parent=0 // pred_check
    _
  $region19: #{tpu_custom_call.1} parent=0 // pred_check_branch
    %115 = sbr.rel (0) target = $region21
  $region20: #{tpu_custom_call.1} parent=0 // pred_region
    _
  $region21: #{tpu_custom_call.1} parent=0 // pred_fallthru
    _

</llo_original>
